<compile_context>
chip_gen: v7x
topology: tpu7x:2x2x1
jax: 0.10.0
libtpu: 0.0.40
codegen_flags: <defaults>
</compile_context>

<pallas_src>
import functools

import jax
import jax.numpy as jnp
from jax import lax
from jax.experimental import pallas as pl
from jax.experimental.pallas import tpu as pltpu

# ----------------------------- problem sizes ---------------------------------
NH = 5          # humans per scene
N = 1 + NH      # robot + humans
DR = 9          # robot state feature size
DH = 5          # human state feature size
X_DIM = 32      # config.gcn.X_dim
EMB_H = 64      # hidden size of the embedding MLPs
MP_H = 64       # config.model_predictive_rl.motion_predictor_dims = [64, 5]
MP_OUT = 5
TIME_STEP = 0.25
KINEMATICS = "holonomic"

# --------------------------- packed weight slabs -------------------------------
# One bf16 (344,128) weight slab + one f32 (8,128) bias slab; both fetched ONCE per
# pallas_call (constant index_map) and carved up with static ref slices in-kernel.
# Every weight block is at lane offset 0 and an 8-row-aligned offset.
SLAB_LANES = 128
OFF_WR1 = 0      # (DR, EMB_H)      rows [0, 16)
OFF_WH1 = 16     # (DH, EMB_H)      rows [16, 24)
OFF_WR2 = 24     # (EMB_H, X_DIM)   rows [24, 88)
OFF_WH2 = 88     # (EMB_H, X_DIM)   rows [88, 152)
OFF_WA = 152     # (X_DIM, X_DIM)
OFF_WG1 = 184    # (X_DIM, X_DIM)
OFF_WG2 = 216    # (X_DIM, X_DIM)
OFF_WP1 = 248    # (X_DIM, MP_H)
OFF_WP2 = 280    # (MP_H, 128)      wp2 lane-padded -> lane-dense final matmul/store
W_ROWS = 344
# TODO(synk): lane-sharing the (·,32)-wide blocks would shrink the slab to ~230 rows
#             but puts MXU operands at non-zero lane offsets (relayouts); low priority.

ROW_BR1, ROW_BH1, ROW_BR2, ROW_BH2, ROW_BP1, ROW_BP2 = range(6)
B_ROWS = 8


def pack_params(params, weight_dtype=jnp.bfloat16):
    """Pack the 15 weight/bias arrays into (W_ROWS,128) weights + (8,128) f32 biases."""
    (wr1, br1, wr2, br2, wh1, bh1, wh2, bh2,
     wa, wg1, wg2, wp1, bp1, wp2, bp2) = params
    w = jnp.zeros((W_ROWS, SLAB_LANES), jnp.float32)
    w = w.at[OFF_WR1:OFF_WR1 + DR, :EMB_H].set(wr1)
    w = w.at[OFF_WH1:OFF_WH1 + DH, :EMB_H].set(wh1)
    w = w.at[OFF_WR2:OFF_WR2 + EMB_H, :X_DIM].set(wr2)
    w = w.at[OFF_WH2:OFF_WH2 + EMB_H, :X_DIM].set(wh2)
    w = w.at[OFF_WA:OFF_WA + X_DIM, :X_DIM].set(wa)
    w = w.at[OFF_WG1:OFF_WG1 + X_DIM, :X_DIM].set(wg1)
    w = w.at[OFF_WG2:OFF_WG2 + X_DIM, :X_DIM].set(wg2)
    w = w.at[OFF_WP1:OFF_WP1 + X_DIM, :MP_H].set(wp1)
    w = w.at[OFF_WP2:OFF_WP2 + MP_H, :MP_OUT].set(wp2)   # lanes 5..127 stay zero
    b = jnp.zeros((B_ROWS, SLAB_LANES), jnp.float32)
    b = b.at[ROW_BR1, :EMB_H].set(br1[0])
    b = b.at[ROW_BH1, :EMB_H].set(bh1[0])
    b = b.at[ROW_BR2, :X_DIM].set(br2[0])
    b = b.at[ROW_BH2, :X_DIM].set(bh2[0])
    b = b.at[ROW_BP1, :MP_H].set(bp1[0])
    b = b.at[ROW_BP2, :MP_OUT].set(bp2[0])
    return w.astype(weight_dtype), b


# ------------------------------- Pallas kernel --------------------------------
def state_predictor_kernel(robot_ref, human_ref, wslab_ref, bias_ref, out_ref, *, tb):
    f32 = jnp.float32
    RH = tb * NH                 # human rows come first (rows [0, RH))
    R = tb * N                   # total agent rows per grid step
    cdt = wslab_ref.dtype        # MXU input dtype (bf16 by default); f32 accumulate

    def w(off, rows, cols):      # static slab slice, loaded at point of use
        return wslab_ref[off:off + rows, :cols]

    def bias(row, cols):         # (1, cols) f32 bias row
        return bias_ref[row:row + 1, :cols]

    def mm(a, b):                # A @ B on the MXU, f32 accumulation
        return jnp.dot(a.astype(cdt), b.astype(cdt), preferred_element_type=f32)

    def mm_t(a, b):              # A @ B.T without materializing a transpose
        return lax.dot_general(a.astype(cdt), b.astype(cdt),
                               (((1,), (1,)), ((), ())), preferred_element_type=f32)

    # --- embedding MLPs, batch folded into the matmul M dimension ---
    eh = jnp.maximum(mm(human_ref[...], w(OFF_WH1, DH, EMB_H)) + bias(ROW_BH1, EMB_H), 0.0)
    eh = jnp.maximum(mm(eh, w(OFF_WH2, EMB_H, X_DIM)) + bias(ROW_BH2, X_DIM), 0.0)   # (RH,32)
    er = jnp.maximum(mm(robot_ref[...], w(OFF_WR1, DR, EMB_H)) + bias(ROW_BR1, EMB_H), 0.0)
    er = jnp.maximum(mm(er, w(OFF_WR2, EMB_H, X_DIM)) + bias(ROW_BR2, X_DIM), 0.0)   # (tb,32)
    x = jnp.concatenate([eh, er], axis=0)                                            # (R, 32)

    # --- embedded-gaussian similarity, masked to each scene's own 6 agents ---
    xw = mm(x, w(OFF_WA, X_DIM, X_DIM))                       # (R, 32)
    s = mm_t(xw, x)                                           # (R, R)
    ri = lax.broadcasted_iota(jnp.int32, (R, 1), 0).astype(f32)
    ci = lax.broadcasted_iota(jnp.int32, (1, R), 1).astype(f32)
    bid_r = jnp.where(ri < RH, jnp.floor(ri / NH), ri - RH)   # scene id per row
    bid_c = jnp.where(ci < RH, jnp.floor(ci / NH), ci - RH)   # scene id per column
    s = jnp.where(bid_r == bid_c, s, jnp.float32(-1e30))
    s = s - jnp.max(s, axis=-1, keepdims=True)
    e = jnp.exp(s)
    att = e / jnp.sum(e, axis=-1, keepdims=True)              # off-scene entries == 0

    # --- 2 GCN layers: H' = relu(A H W); A is block-diagonal by construction ---
    h1 = jnp.maximum(mm(mm(att, x), w(OFF_WG1, X_DIM, X_DIM)), 0.0)
    h2 = jnp.maximum(mm(mm(att, h1), w(OFF_WG2, X_DIM, X_DIM)), 0.0)                 # (R,32)

    # --- human_motion_predictor on the human rows only (rows [0, RH)) ---
    m1 = jnp.maximum(mm(h2[:RH, :], w(OFF_WP1, X_DIM, MP_H)) + bias(ROW_BP1, MP_H), 0.0)
    out_ref[...] = mm(m1, w(OFF_WP2, MP_H, SLAB_LANES)) + bias(ROW_BP2, SLAB_LANES)  # (RH,128)


# --------------------------------- wrapper ------------------------------------
def _default_batch_tile(batch):
    if batch <= 16:
        return batch                        # single grid step; blocks == full arrays
    # multiple of 8 (block tiling), capped at 32 scenes (=192 agent rows) per step,
    # and chosen so larger batches split over >= 2 steps (2 TensorCores on v7x).
    return min(32, 8 * (-(-batch // 16)))


def predict_next_human_states(robot_state, human_states, wslab, bslab, *, batch_tile=None):
    """graph_model + human_motion_predictor: (B,1,DR),(B,NH,DH) -> (B,NH,MP_OUT)."""
    batch = robot_state.shape[0]
    assert robot_state.shape[1:] == (1, DR) and human_states.shape[1:] == (NH, DH)

    if batch_tile is None:
        batch_tile = _default_batch_tile(batch)
    batch_tile = max(1, min(batch_tile, batch))
    if batch_tile < batch and batch_tile % 8:
        raise ValueError("batch_tile must be a multiple of 8 when the grid has > 1 step")

    # only free reshapes here -- no pad/concat fusion in front of the kernel
    rob = robot_state.reshape(batch, DR).astype(jnp.float32)
    hum = human_states.reshape(batch * NH, DH).astype(jnp.float32)

    pad_b = (-batch) % batch_tile
    if pad_b:
        rob = jnp.pad(rob, ((0, pad_b), (0, 0)))
        hum = jnp.pad(hum, ((0, pad_b * NH), (0, 0)))
    bp = batch + pad_b
    tb = batch_tile

    out = pl.pallas_call(
        functools.partial(state_predictor_kernel, tb=tb),
        out_shape=jax.ShapeDtypeStruct((bp * NH, SLAB_LANES), jnp.float32),
        grid=(bp // tb,),
        in_specs=[
            pl.BlockSpec((tb, DR), lambda b: (b, 0)),
            pl.BlockSpec((tb * NH, DH), lambda b: (b, 0)),
            pl.BlockSpec((W_ROWS, SLAB_LANES), lambda b: (0, 0)),   # fetched once
            pl.BlockSpec((B_ROWS, SLAB_LANES), lambda b: (0, 0)),   # fetched once
        ],
        out_specs=pl.BlockSpec((tb * NH, SLAB_LANES), lambda b: (b, 0)),
        compiler_params=pltpu.CompilerParams(dimension_semantics=("parallel",)),
    )(rob, hum, wslab, bslab)
    # TODO(synk): for MPC rollouts, keep the weight slab resident across calls via a
    #             cross-pallas_call prefetch (P10) instead of re-DMAing it each step.

    # drop batch padding + the 123 lane-padding columns (free XLA views)
    return out[:batch * NH, :MP_OUT].reshape(batch, NH, MP_OUT)


# --------------------------- compute_next_state (glue) ------------------------
def compute_next_state(robot_state, action, time_step=TIME_STEP):
    """Holonomic kinematics update on the (1,1,DR) robot row (mirrors PyTorch)."""
    if robot_state.shape[0] != 1:
        raise NotImplementedError
    s = jnp.squeeze(robot_state)                 # (DR,)
    next_angle = s[2] + action[1]
    vx = action[0] * jnp.cos(next_angle)
    vy = action[0] * jnp.sin(next_angle)
    s = s.at[0].add(vx * time_step)
    s = s.at[1].add(vy * time_step)
    s = s.at[2].set(next_angle)
    s = s.at[4].set(vx)
    s = s.at[5].set(vy)
    return s[None, None, :]                      # (1, 1, DR)
# TODO(synk): fold compute_next_state (9 scalar ops) into the kernel when action is
#             not None to save one tiny XLA fusion dispatch.
# TODO(synk): 'single_track' kinematics needs an external motion_model; not translated.


# --------------------------------- forward ------------------------------------
def state_predictor_forward(state, action, wslab, bslab, detach=False):
    robot_state, human_states, extra = state
    assert robot_state.ndim == 3 and human_states.ndim == 3 and extra.ndim == 3
    human_identifiers = None                     # state[1] is a plain tensor here

    next_robot_state = None if action is None else compute_next_state(robot_state, action)
    next_human_states = predict_next_human_states(robot_state, human_states, wslab, bslab)
    return (next_robot_state, (next_human_states, human_identifiers), extra)


# ---------------------------- deterministic params -----------------------------
def make_params():
    ks = jax.random.split(jax.random.PRNGKey(42), 16)

    def w(k, shape, fan_in):
        return jax.random.normal(k, shape, jnp.float32) / jnp.sqrt(jnp.float32(fan_in))

    def b(k, n):
        return 0.1 * jax.random.normal(k, (1, n), jnp.float32)

    return [
        w(ks[0], (DR, EMB_H), DR),        b(ks[1], EMB_H),    # wr1, br1
        w(ks[2], (EMB_H, X_DIM), EMB_H),  b(ks[3], X_DIM),    # wr2, br2
        w(ks[4], (DH, EMB_H), DH),        b(ks[5], EMB_H),    # wh1, bh1
        w(ks[6], (EMB_H, X_DIM), EMB_H),  b(ks[7], X_DIM),    # wh2, bh2
        w(ks[8], (X_DIM, X_DIM), X_DIM),                      # Wa
        w(ks[9], (X_DIM, X_DIM), X_DIM),                      # Wg1
        w(ks[10], (X_DIM, X_DIM), X_DIM),                     # Wg2
        w(ks[11], (X_DIM, MP_H), X_DIM),  b(ks[12], MP_H),    # wp1, bp1
        w(ks[13], (MP_H, MP_OUT), MP_H),  b(ks[14], MP_OUT),  # wp2, bp2
    ]


# -------------------------- pure-JAX reference (check) --------------------------
def reference_next_human_states(robot_state, human_states, params,
                                compute_dtype=jnp.bfloat16):
    """Same matmul numerics as the kernel: compute_dtype MXU inputs, f32 accumulate,
    f32 biases / softmax.  compute_dtype must match the packed weight-slab dtype."""
    (wr1, br1, wr2, br2, wh1, bh1, wh2, bh2,
     wa, wg1, wg2, wp1, bp1, wp2, bp2) = params
    c = lambda t: t.astype(compute_dtype)

    def dot(a, b):
        return jnp.matmul(c(a), c(b), preferred_element_type=jnp.float32)

    er = jax.nn.relu(dot(robot_state, wr1) + br1)
    er = jax.nn.relu(dot(er, wr2) + br2)
    eh = jax.nn.relu(dot(human_states, wh1) + bh1)
    eh = jax.nn.relu(dot(eh, wh2) + bh2)
    x = jnp.concatenate([er, eh], axis=1)                      # (B, N, X_DIM)
    xw = dot(x, wa)
    s = jnp.matmul(c(xw), jnp.swapaxes(c(x), -1, -2), preferred_element_type=jnp.float32)
    att = jax.nn.softmax(s, axis=-1)
    h1 = jax.nn.relu(dot(dot(att, x), wg1))
    h2 = jax.nn.relu(dot(dot(att, h1), wg2))
    m1 = jax.nn.relu(dot(h2, wp1) + bp1)
    return (dot(m1, wp2) + bp2)[:, 1:, :]


# ----------------------------------- main --------------------------------------
if __name__ == "__main__":
    key = jax.random.PRNGKey(0)
    k1, k2, k3, k4, k5, k6 = jax.random.split(key, 6)

    params = make_params()
    wslab, bslab = pack_params(params)           # bf16 weights, f32 biases

    # ---- batch = 1 full forward (compute_next_state requires batch == 1) ----
    robot_state = jax.random.normal(k1, (1, 1, DR), jnp.float32)    # (1, 1, 9)
    human_states = jax.random.normal(k2, (1, NH, DH), jnp.float32)  # (1, 5, 5)
    extra = jax.random.normal(k3, (1, 1, 4), jnp.float32)           # state[2] (3-D)
    action = jax.random.normal(k4, (2,), jnp.float32)               # (speed, rot)
    state = (robot_state, human_states, extra)

    next_robot_state, (next_human_states, human_ids), passthrough = \
        state_predictor_forward(state, action, wslab, bslab)
    jax.block_until_ready(next_human_states)
    jax.block_until_ready(next_robot_state)

    assert next_robot_state.shape == (1, 1, DR)
    assert next_human_states.shape == (1, NH, MP_OUT)
    assert human_ids is None
    assert passthrough.shape == extra.shape

    ref1 = reference_next_human_states(robot_state, human_states, params)
    assert jnp.allclose(next_human_states, ref1, atol=2e-3, rtol=2e-3), \
        float(jnp.max(jnp.abs(next_human_states - ref1)))

    # ---- batch = 24 (action=None usage): default tile -> grid=2, batch padding ----
    B2 = 24
    robot_b = jax.random.normal(k5, (B2, 1, DR), jnp.float32)
    human_b = jax.random.normal(k6, (B2, NH, DH), jnp.float32)
    out_b = predict_next_human_states(robot_b, human_b, wslab, bslab)
    jax.block_until_ready(out_b)
    assert out_b.shape == (B2, NH, MP_OUT)
    ref2 = reference_next_human_states(robot_b, human_b, params)
    assert jnp.allclose(out_b, ref2, atol=2e-3, rtol=2e-3), \
        float(jnp.max(jnp.abs(out_b - ref2)))

    print("KERNEL_OK")
</pallas_src>

<mosaic_0001>
module attributes {stable_mosaic.version = 11 : i64} {
  func.func @state_predictor_kernel(%arg0: i32, %arg1: memref<1x9xf32, #tpu.memory_space<vmem>>, %arg2: memref<5x5xf32, #tpu.memory_space<vmem>>, %arg3: memref<344x128xbf16, #tpu.memory_space<vmem>>, %arg4: memref<8x128xf32, #tpu.memory_space<vmem>>, %arg5: memref<5x128xf32, #tpu.memory_space<vmem>>) attributes {dimension_semantics = [#tpu.dimension_semantics<parallel>], iteration_bounds = array<i64: 1>, scalar_prefetch = 0 : i64, scratch_operands = 0 : i64, tpu.core_type = #tpu.core_type<tc>, window_params = [{transform_indices = @transform_0, window_bounds = array<i64: 1, 9>}, {transform_indices = @transform_1, window_bounds = array<i64: 5, 5>}, {pipeline_mode = #tpu.pipeline_mode<synchronous>, transform_indices = @transform_2, window_bounds = array<i64: 344, 128>}, {pipeline_mode = #tpu.pipeline_mode<synchronous>, transform_indices = @transform_3, window_bounds = array<i64: 8, 128>}, {transform_indices = @transform_4, window_bounds = array<i64: 5, 128>}]} {
    %c0 = arith.constant 0 : index
    %c0_0 = arith.constant 0 : index
    %0 = vector.load %arg2[%c0, %c0_0] : memref<5x5xf32, #tpu.memory_space<vmem>>, vector<5x5xf32>
    %c16 = arith.constant 16 : index
    %c0_1 = arith.constant 0 : index
    %1 = vector.load %arg3[%c16, %c0_1] : memref<344x128xbf16, #tpu.memory_space<vmem>>, vector<5x64xbf16>
    %2 = arith.truncf %0 : vector<5x5xf32> to vector<5x5xbf16>
    %cst = arith.constant dense<0.000000e+00> : vector<5x64xf32>
    %3 = tpu.matmul %2, %1, %cst {dimension_numbers = #tpu.dot_dimension_numbers<[1], [0], [0], [1], [0, 0, 1, 1], [], []>} : vector<5x5xbf16>, vector<5x64xbf16>, vector<5x64xf32> -> vector<5x64xf32>
    %c1 = arith.constant 1 : index
    %c0_2 = arith.constant 0 : index
    %4 = vector.load %arg4[%c1, %c0_2] : memref<8x128xf32, #tpu.memory_space<vmem>>, vector<1x64xf32>
    %5 = vector.broadcast %4 : vector<1x64xf32> to vector<5x64xf32>
    %6 = arith.addf %3, %5 : vector<5x64xf32>
    %cst_3 = arith.constant 0.000000e+00 : f32
    %7 = vector.broadcast %cst_3 : f32 to vector<5x64xf32>
    %8 = arith.maximumf %6, %7 : vector<5x64xf32>
    %c88 = arith.constant 88 : index
    %c0_4 = arith.constant 0 : index
    %9 = vector.load %arg3[%c88, %c0_4] : memref<344x128xbf16, #tpu.memory_space<vmem>>, vector<64x32xbf16>
    %10 = arith.truncf %8 : vector<5x64xf32> to vector<5x64xbf16>
    %cst_5 = arith.constant dense<0.000000e+00> : vector<5x32xf32>
    %11 = tpu.matmul %10, %9, %cst_5 {dimension_numbers = #tpu.dot_dimension_numbers<[1], [0], [0], [1], [0, 0, 1, 1], [], []>} : vector<5x64xbf16>, vector<64x32xbf16>, vector<5x32xf32> -> vector<5x32xf32>
    %c3 = arith.constant 3 : index
    %c0_6 = arith.constant 0 : index
    %12 = vector.load %arg4[%c3, %c0_6] : memref<8x128xf32, #tpu.memory_space<vmem>>, vector<1x32xf32>
    %13 = vector.broadcast %12 : vector<1x32xf32> to vector<5x32xf32>
    %14 = arith.addf %11, %13 : vector<5x32xf32>
    %cst_7 = arith.constant 0.000000e+00 : f32
    %15 = vector.broadcast %cst_7 : f32 to vector<5x32xf32>
    %16 = arith.maximumf %14, %15 : vector<5x32xf32>
    %c0_8 = arith.constant 0 : index
    %c0_9 = arith.constant 0 : index
    %17 = vector.load %arg1[%c0_8, %c0_9] : memref<1x9xf32, #tpu.memory_space<vmem>>, vector<1x9xf32>
    %c0_10 = arith.constant 0 : index
    %c0_11 = arith.constant 0 : index
    %18 = vector.load %arg3[%c0_10, %c0_11] : memref<344x128xbf16, #tpu.memory_space<vmem>>, vector<9x64xbf16>
    %19 = arith.truncf %17 : vector<1x9xf32> to vector<1x9xbf16>
    %cst_12 = arith.constant dense<0.000000e+00> : vector<1x64xf32>
    %20 = tpu.matmul %19, %18, %cst_12 {dimension_numbers = #tpu.dot_dimension_numbers<[1], [0], [0], [1], [0, 0, 1, 1], [], []>} : vector<1x9xbf16>, vector<9x64xbf16>, vector<1x64xf32> -> vector<1x64xf32>
    %c0_13 = arith.constant 0 : index
    %c0_14 = arith.constant 0 : index
    %21 = vector.load %arg4[%c0_13, %c0_14] : memref<8x128xf32, #tpu.memory_space<vmem>>, vector<1x64xf32>
    %22 = arith.addf %20, %21 : vector<1x64xf32>
    %cst_15 = arith.constant 0.000000e+00 : f32
    %23 = vector.broadcast %cst_15 : f32 to vector<1x64xf32>
    %24 = arith.maximumf %22, %23 : vector<1x64xf32>
    %c24 = arith.constant 24 : index
    %c0_16 = arith.constant 0 : index
    %25 = vector.load %arg3[%c24, %c0_16] : memref<344x128xbf16, #tpu.memory_space<vmem>>, vector<64x32xbf16>
    %26 = arith.truncf %24 : vector<1x64xf32> to vector<1x64xbf16>
    %cst_17 = arith.constant dense<0.000000e+00> : vector<1x32xf32>
    %27 = tpu.matmul %26, %25, %cst_17 {dimension_numbers = #tpu.dot_dimension_numbers<[1], [0], [0], [1], [0, 0, 1, 1], [], []>} : vector<1x64xbf16>, vector<64x32xbf16>, vector<1x32xf32> -> vector<1x32xf32>
    %c2 = arith.constant 2 : index
    %c0_18 = arith.constant 0 : index
    %28 = vector.load %arg4[%c2, %c0_18] : memref<8x128xf32, #tpu.memory_space<vmem>>, vector<1x32xf32>
    %29 = arith.addf %27, %28 : vector<1x32xf32>
    %cst_19 = arith.constant 0.000000e+00 : f32
    %30 = vector.broadcast %cst_19 : f32 to vector<1x32xf32>
    %31 = arith.maximumf %29, %30 : vector<1x32xf32>
    %32 = tpu.concatenate %16, %31 in 0 : vector<5x32xf32>, vector<1x32xf32> -> vector<6x32xf32>
    %c152 = arith.constant 152 : index
    %c0_20 = arith.constant 0 : index
    %33 = vector.load %arg3[%c152, %c0_20] : memref<344x128xbf16, #tpu.memory_space<vmem>>, vector<32x32xbf16>
    %34 = arith.truncf %32 : vector<6x32xf32> to vector<6x32xbf16>
    %cst_21 = arith.constant dense<0.000000e+00> : vector<6x32xf32>
    %35 = tpu.matmul %34, %33, %cst_21 {dimension_numbers = #tpu.dot_dimension_numbers<[1], [0], [0], [1], [0, 0, 1, 1], [], []>} : vector<6x32xbf16>, vector<32x32xbf16>, vector<6x32xf32> -> vector<6x32xf32>
    %36 = arith.truncf %35 : vector<6x32xf32> to vector<6x32xbf16>
    %37 = arith.truncf %32 : vector<6x32xf32> to vector<6x32xbf16>
    %cst_22 = arith.constant dense<0.000000e+00> : vector<6x6xf32>
    %38 = tpu.matmul %36, %37, %cst_22 {dimension_numbers = #tpu.dot_dimension_numbers<[1], [1], [0], [0], [0, 0, 1, 0], [], []>} : vector<6x32xbf16>, vector<6x32xbf16>, vector<6x6xf32> -> vector<6x6xf32>
    %39 = tpu.iota {dimensions = array<i32: 0>} : vector<6x1xi32>
    %40 = arith.sitofp %39 : vector<6x1xi32> to vector<6x1xf32>
    %41 = tpu.iota {dimensions = array<i32: 1>} : vector<1x6xi32>
    %42 = arith.sitofp %41 : vector<1x6xi32> to vector<1x6xf32>
    %cst_23 = arith.constant 5.000000e+00 : f32
    %43 = vector.broadcast %cst_23 : f32 to vector<6x1xf32>
    %44 = arith.cmpf olt, %40, %43 : vector<6x1xf32>
    %cst_24 = arith.constant 5.000000e+00 : f32
    %45 = vector.broadcast %cst_24 : f32 to vector<6x1xf32>
    %46 = arith.divf %40, %45 : vector<6x1xf32>
    %47 = math.floor %46 : vector<6x1xf32>
    %cst_25 = arith.constant 5.000000e+00 : f32
    %48 = vector.broadcast %cst_25 : f32 to vector<6x1xf32>
    %49 = arith.subf %40, %48 : vector<6x1xf32>
    %50 = arith.select %44, %47, %49 : vector<6x1xi1>, vector<6x1xf32>
    %cst_26 = arith.constant 5.000000e+00 : f32
    %51 = vector.broadcast %cst_26 : f32 to vector<1x6xf32>
    %52 = arith.cmpf olt, %42, %51 : vector<1x6xf32>
    %cst_27 = arith.constant 5.000000e+00 : f32
    %53 = vector.broadcast %cst_27 : f32 to vector<1x6xf32>
    %54 = arith.divf %42, %53 : vector<1x6xf32>
    %55 = math.floor %54 : vector<1x6xf32>
    %cst_28 = arith.constant 5.000000e+00 : f32
    %56 = vector.broadcast %cst_28 : f32 to vector<1x6xf32>
    %57 = arith.subf %42, %56 : vector<1x6xf32>
    %58 = arith.select %52, %55, %57 : vector<1x6xi1>, vector<1x6xf32>
    %59 = vector.broadcast %50 : vector<6x1xf32> to vector<6x6xf32>
    %60 = vector.broadcast %58 : vector<1x6xf32> to vector<6x6xf32>
    %61 = arith.cmpf oeq, %59, %60 : vector<6x6xf32>
    %cst_29 = arith.constant -1.000000e+30 : f32
    %62 = vector.broadcast %cst_29 : f32 to vector<6x6xf32>
    %63 = arith.select %61, %38, %62 : vector<6x6xi1>, vector<6x6xf32>
    %cst_30 = arith.constant dense<0xFF800000> : vector<6xf32>
    %64 = vector.multi_reduction <maximumf>, %63, %cst_30 [1] : vector<6x6xf32> to vector<6xf32>
    %65 = vector.shape_cast %64 : vector<6xf32> to vector<6x1xf32>
    %66 = vector.broadcast %65 : vector<6x1xf32> to vector<6x6xf32>
    %67 = arith.subf %63, %66 : vector<6x6xf32>
    %68 = math.exp %67 : vector<6x6xf32>
    %cst_31 = arith.constant dense<0.000000e+00> : vector<6xf32>
    %69 = vector.multi_reduction <add>, %68, %cst_31 [1] : vector<6x6xf32> to vector<6xf32>
    %70 = vector.shape_cast %69 : vector<6xf32> to vector<6x1xf32>
    %71 = vector.broadcast %70 : vector<6x1xf32> to vector<6x6xf32>
    %72 = arith.divf %68, %71 : vector<6x6xf32>
    %73 = arith.truncf %72 : vector<6x6xf32> to vector<6x6xbf16>
    %74 = arith.truncf %32 : vector<6x32xf32> to vector<6x32xbf16>
    %cst_32 = arith.constant dense<0.000000e+00> : vector<6x32xf32>
    %75 = tpu.matmul %73, %74, %cst_32 {dimension_numbers = #tpu.dot_dimension_numbers<[1], [0], [0], [1], [0, 0, 1, 1], [], []>} : vector<6x6xbf16>, vector<6x32xbf16>, vector<6x32xf32> -> vector<6x32xf32>
    %c184 = arith.constant 184 : index
    %c0_33 = arith.constant 0 : index
    %76 = vector.load %arg3[%c184, %c0_33] : memref<344x128xbf16, #tpu.memory_space<vmem>>, vector<32x32xbf16>
    %77 = arith.truncf %75 : vector<6x32xf32> to vector<6x32xbf16>
    %cst_34 = arith.constant dense<0.000000e+00> : vector<6x32xf32>
    %78 = tpu.matmul %77, %76, %cst_34 {dimension_numbers = #tpu.dot_dimension_numbers<[1], [0], [0], [1], [0, 0, 1, 1], [], []>} : vector<6x32xbf16>, vector<32x32xbf16>, vector<6x32xf32> -> vector<6x32xf32>
    %cst_35 = arith.constant 0.000000e+00 : f32
    %79 = vector.broadcast %cst_35 : f32 to vector<6x32xf32>
    %80 = arith.maximumf %78, %79 : vector<6x32xf32>
    %81 = arith.truncf %72 : vector<6x6xf32> to vector<6x6xbf16>
    %82 = arith.truncf %80 : vector<6x32xf32> to vector<6x32xbf16>
    %cst_36 = arith.constant dense<0.000000e+00> : vector<6x32xf32>
    %83 = tpu.matmul %81, %82, %cst_36 {dimension_numbers = #tpu.dot_dimension_numbers<[1], [0], [0], [1], [0, 0, 1, 1], [], []>} : vector<6x6xbf16>, vector<6x32xbf16>, vector<6x32xf32> -> vector<6x32xf32>
    %c216 = arith.constant 216 : index
    %c0_37 = arith.constant 0 : index
    %84 = vector.load %arg3[%c216, %c0_37] : memref<344x128xbf16, #tpu.memory_space<vmem>>, vector<32x32xbf16>
    %85 = arith.truncf %83 : vector<6x32xf32> to vector<6x32xbf16>
    %cst_38 = arith.constant dense<0.000000e+00> : vector<6x32xf32>
    %86 = tpu.matmul %85, %84, %cst_38 {dimension_numbers = #tpu.dot_dimension_numbers<[1], [0], [0], [1], [0, 0, 1, 1], [], []>} : vector<6x32xbf16>, vector<32x32xbf16>, vector<6x32xf32> -> vector<6x32xf32>
    %cst_39 = arith.constant 0.000000e+00 : f32
    %87 = vector.broadcast %cst_39 : f32 to vector<6x32xf32>
    %88 = arith.maximumf %86, %87 : vector<6x32xf32>
    %89 = vector.extract_strided_slice %88 {offsets = [0, 0], sizes = [5, 32], strides = [1, 1]} : vector<6x32xf32> to vector<5x32xf32>
    %c248 = arith.constant 248 : index
    %c0_40 = arith.constant 0 : index
    %90 = vector.load %arg3[%c248, %c0_40] : memref<344x128xbf16, #tpu.memory_space<vmem>>, vector<32x64xbf16>
    %91 = arith.truncf %89 : vector<5x32xf32> to vector<5x32xbf16>
    %cst_41 = arith.constant dense<0.000000e+00> : vector<5x64xf32>
    %92 = tpu.matmul %91, %90, %cst_41 {dimension_numbers = #tpu.dot_dimension_numbers<[1], [0], [0], [1], [0, 0, 1, 1], [], []>} : vector<5x32xbf16>, vector<32x64xbf16>, vector<5x64xf32> -> vector<5x64xf32>
    %c4 = arith.constant 4 : index
    %c0_42 = arith.constant 0 : index
    %93 = vector.load %arg4[%c4, %c0_42] : memref<8x128xf32, #tpu.memory_space<vmem>>, vector<1x64xf32>
    %94 = vector.broadcast %93 : vector<1x64xf32> to vector<5x64xf32>
    %95 = arith.addf %92, %94 : vector<5x64xf32>
    %cst_43 = arith.constant 0.000000e+00 : f32
    %96 = vector.broadcast %cst_43 : f32 to vector<5x64xf32>
    %97 = arith.maximumf %95, %96 : vector<5x64xf32>
    %c280 = arith.constant 280 : index
    %c0_44 = arith.constant 0 : index
    %98 = vector.load %arg3[%c280, %c0_44] : memref<344x128xbf16, #tpu.memory_space<vmem>>, vector<64x128xbf16>
    %99 = arith.truncf %97 : vector<5x64xf32> to vector<5x64xbf16>
    %cst_45 = arith.constant dense<0.000000e+00> : vector<5x128xf32>
    %100 = tpu.matmul %99, %98, %cst_45 {dimension_numbers = #tpu.dot_dimension_numbers<[1], [0], [0], [1], [0, 0, 1, 1], [], []>} : vector<5x64xbf16>, vector<64x128xbf16>, vector<5x128xf32> -> vector<5x128xf32>
    %c5 = arith.constant 5 : index
    %c0_46 = arith.constant 0 : index
    %101 = vector.load %arg4[%c5, %c0_46] : memref<8x128xf32, #tpu.memory_space<vmem>>, vector<1x128xf32>
    %102 = vector.broadcast %101 : vector<1x128xf32> to vector<5x128xf32>
    %103 = arith.addf %100, %102 : vector<5x128xf32>
    %c0_47 = arith.constant 0 : index
    %c0_48 = arith.constant 0 : index
    %104 = vector.load %arg5[%c0_47, %c0_48] : memref<5x128xf32, #tpu.memory_space<vmem>>, vector<5x128xf32>
    tpu.vector_store %arg5[%c0_47, %c0_48], %103 {strides = array<i32>} : memref<5x128xf32, #tpu.memory_space<vmem>>, vector<5x128xf32>,
    return
  }
  func.func @transform_0(%arg0: i32) -> (i32, i32) {
    %c0_i32 = arith.constant 0 : i32
    %c0_i32_0 = arith.constant 0 : i32
    return %arg0, %c0_i32 : i32, i32
  }
  func.func @transform_1(%arg0: i32) -> (i32, i32) {
    %c0_i32 = arith.constant 0 : i32
    %c0_i32_0 = arith.constant 0 : i32
    return %arg0, %c0_i32 : i32, i32
  }
  func.func @transform_2(%arg0: i32) -> (i32, i32) {
    %c0_i32 = arith.constant 0 : i32
    %c0_i32_0 = arith.constant 0 : i32
    %c0_i32_1 = arith.constant 0 : i32
    return %c0_i32, %c0_i32_0 : i32, i32
  }
  func.func @transform_3(%arg0: i32) -> (i32, i32) {
    %c0_i32 = arith.constant 0 : i32
    %c0_i32_0 = arith.constant 0 : i32
    %c0_i32_1 = arith.constant 0 : i32
    return %c0_i32, %c0_i32_0 : i32, i32
  }
  func.func @transform_4(%arg0: i32) -> (i32, i32) {
    %c0_i32 = arith.constant 0 : i32
    %c0_i32_0 = arith.constant 0 : i32
    return %arg0, %c0_i32 : i32, i32
  }
}

</mosaic_0001>

<llo_original>
// kernel: tpu_custom_call.1
$region0: #{tpu_custom_call.1}
  #allocation0 [shape = 'u32[]', space=smem, size = 0x4, offset = 0x4, fixed_abs, tag = 'smem constant byte address 0x4 - core index']
  #allocation1 [shape = 'u32[144,128]{1,0:T(1,128)}', space=vmem, size = 0x12000, scoped, tag = 'internal scratch']
  %s0 = inlined_call_operand.hbm [shape: f32[1,9], index: 0, kind: input, shape index: {}]
  %s1 = inlined_call_operand.hbm [shape: f32[5,5], index: 1, kind: input, shape index: {}]
  %s2 = inlined_call_operand.hbm [shape: bf16[344,128], index: 2, kind: input, shape index: {}]
  %s3 = inlined_call_operand.vmem [shape: f32[8,128], index: 3, kind: input, shape index: {}]
  %s4 = inlined_call_operand.hbm [shape: f32[5,128], index: 4, kind: output, shape index: {}]
  %s5 = sld [smem:[#allocation0]]
  $region38: #{tpu_custom_call.1} parent=0
    _
  %s7 = ssub.s32 1, %s5
  %s8 = scalar_select 0, %s7, %s5
  $region1: #{tpu_custom_call.1} parent=0
    #allocation2 [shape = 'u8[512]{0}', space=vmem, size = 0x400, scoped, tag = 'input window, operand 0, single buffered']
    #allocation3 [shape = 's32[1]{0}', space=sflag, size = 0x4, scoped, tag = 'scoped memory for tpu_custom_call.1']
    #allocation4 [shape = 's32[1]{0}', space=sflag, size = 0x4, scoped, tag = 'scoped memory for tpu_custom_call.1']
    #allocation5 [shape = 'u8[4096]{0}', space=vmem, size = 0x1000, scoped, tag = 'input window, operand 1, single buffered']
    #allocation6 [shape = 's32[1]{0}', space=sflag, size = 0x4, scoped, tag = 'scoped memory for tpu_custom_call.1']
    #allocation7 [shape = 'u8[88064]{0}', space=vmem, size = 0x15800, scoped, tag = 'input window, operand 2, single buffered']
    #allocation8 [shape = 'u8[4096]{0}', space=vmem, size = 0x1000, scoped, tag = 'output window, operand 0, single buffered']
    %9 = vsyncpa [#allocation3], 0
    %10 = vsyncpa [#allocation6], 0
    %11 = vsyncpa [#allocation4], 0
    // Predicated region
    $region2: #{tpu_custom_call.1} parent=1 // pred_check
      _
    $region3: #{tpu_custom_call.1} parent=1 // pred_check_branch
      %13 = sbr.rel (0) target = $region5
    $region4: #{tpu_custom_call.1} parent=1 // pred_region
      %s15 = ssub.s32 16, 16
      %16 = vsyncadd [#allocation3], %s15
      %s18 = sshll.u32 [#allocation2], 4
      %s19 = int_to_ptr.vmem [resolvable:$true] %s18
      %21 = dma.hbm_to_vmem [thread:$0]  %s0, 16, %s19, [#allocation3]
    $region5: #{tpu_custom_call.1} parent=1 // pred_fallthru
      _
    // Predicated region
    $region6: #{tpu_custom_call.1} parent=1 // pred_check
      _
    $region7: #{tpu_custom_call.1} parent=1 // pred_check_branch
      %23 = sbr.rel (0) target = $region9
    $region8: #{tpu_custom_call.1} parent=1 // pred_region
      %s25 = ssub.s32 128, 128
      %26 = vsyncadd [#allocation6], %s25
      %s28 = sshll.u32 [#allocation5], 4
      %s29 = int_to_ptr.vmem [resolvable:$true] %s28
      %31 = dma.hbm_to_vmem [thread:$0]  %s1, 128, %s29, [#allocation6]
    $region9: #{tpu_custom_call.1} parent=1 // pred_fallthru
      _
    // Predicated region
    $region10: #{tpu_custom_call.1} parent=1 // pred_check
      _
    $region11: #{tpu_custom_call.1} parent=1 // pred_check_branch
      %33 = sbr.rel (0) target = $region13
    $region12: #{tpu_custom_call.1} parent=1 // pred_region
      %s35 = ssub.s32 2752, 2752
      %36 = vsyncadd [#allocation6], %s35
      %s37 = sshll.u32 [#allocation7], 4
      %s38 = int_to_ptr.vmem [resolvable:$true] %s37
      %43 = dma.hbm_to_vmem [thread:$0]  %s2, 2752, %s38, [#allocation6], 64, 64, 4
    $region13: #{tpu_custom_call.1} parent=1 // pred_fallthru
      _
    // Predicated region
    $region14: #{tpu_custom_call.1} parent=1 // pred_check
      _
    $region15: #{tpu_custom_call.1} parent=1 // pred_check_branch
      %45 = sbr.rel (0) target = $region17
    $region16: #{tpu_custom_call.1} parent=1 // pred_region
      _
    $region17: #{tpu_custom_call.1} parent=1 // pred_fallthru
      _
    // Predicated region
    $region18: #{tpu_custom_call.1} parent=1 // pred_check
      _
    $region19: #{tpu_custom_call.1} parent=1 // pred_check_branch
      %47 = sbr.rel (0) target = $region21
    $region20: #{tpu_custom_call.1} parent=1 // pred_region
      %48 = dma.done [#allocation3], 16
    $region21: #{tpu_custom_call.1} parent=1 // pred_fallthru
      _
    // Predicated region
    $region22: #{tpu_custom_call.1} parent=1 // pred_check
      _
    $region23: #{tpu_custom_call.1} parent=1 // pred_check_branch
      %50 = sbr.rel (0) target = $region25
    $region24: #{tpu_custom_call.1} parent=1 // pred_region
      %51 = dma.done [#allocation6], 128
    $region25: #{tpu_custom_call.1} parent=1 // pred_fallthru
      _
    // Predicated region
    $region26: #{tpu_custom_call.1} parent=1 // pred_check
      _
    $region27: #{tpu_custom_call.1} parent=1 // pred_check_branch
      %53 = sbr.rel (0) target = $region29
    $region28: #{tpu_custom_call.1} parent=1 // pred_region
      %54 = dma.done [#allocation6], 2752
    $region29: #{tpu_custom_call.1} parent=1 // pred_fallthru
      _
    %v56 = vld [vmem:[#allocation5] sm:$0x1f]
    %v57 = vld [vmem:[#allocation7 + $0x8] sm:$0x7]
    %v58 = vpack.c.bf16 %v56, %v56
    %v59 = vld [vmem:[%s3 + $0x1] sm:$0x1]
    %v60 = vlaneseq
    %v61 = vshrl.u32 %v60, 7
    %v62 = vsub.s32 0, %v61
    %v63 = vrot.slane %v59, %v62
    %vm64 = vcmask 39936
    %v66 = vsel %vm64, %v58, 0
    %vm68 = vcmask 1041408
    %vm69 = vcmask 1042432
    %v70 = vsel %vm68, 4294967295, 65535
    %v71 = vsel %vm69, %v70, 0
    %v73 = vand.u32 %v57, %v71
    %75 = vmatprep.subr.bf16.mxu0 0
    %76 = vmatpush1.bf16.msra.mxu0 %v73
    %77 = vmatprep.subr.bf16.mxu0 0
    %78 = vmatpush1.bf16.msra.mxu0 0
    %79 = vmatprep.subr.bf16.mxu0 0
    %80 = vmatpush1.bf16.msra.mxu0 0
    %81 = vmatprep.subr.bf16.mxu0 0
    %82 = vmatpush1.bf16.msra.mxu0 0
    %83 = vmatprep.subr.bf16.mxu0 0
    %84 = vmatpush1.bf16.msra.mxu0 0
    %85 = vmatprep.subr.bf16.mxu0 0
    %86 = vmatpush1.bf16.msra.mxu0 0
    %87 = vmatprep.subr.bf16.mxu0 0
    %88 = vmatpush1.bf16.msra.mxu0 0
    %89 = vmatprep.subr.bf16.mxu0 0
    %90 = vmatpush1.bf16.msra.mxu0 0
    %91 = vmatprep.subr.bf16.mxu0 0
    %92 = vmatpush1.bf16.msra.mxu0 0
    %93 = vmatprep.subr.bf16.mxu0 0
    %94 = vmatpush1.bf16.msra.mxu0 0
    %95 = vmatprep.subr.bf16.mxu0 0
    %96 = vmatpush1.bf16.msra.mxu0 0
    %97 = vmatprep.subr.bf16.mxu0 0
    %98 = vmatpush1.bf16.msra.mxu0 0
    %99 = vmatprep.subr.bf16.mxu0 0
    %100 = vmatpush1.bf16.msra.mxu0 0
    %101 = vmatprep.subr.bf16.mxu0 0
    %102 = vmatpush1.bf16.msra.mxu0 0
    %103 = vmatprep.subr.bf16.mxu0 0
    %104 = vmatpush1.bf16.msra.mxu0 0
    %105 = vmatprep.subr.bf16.mxu0 0
    %106 = vmatpush1.bf16.msra.mxu0 0
    %107 = vmatprep.mubr.bf16.mxu0 0
    %108 = vmatmul.mubr.bf16.gmra.mrb[0].mxu0 %v66
    %v109 = vpop.f32.mrb[0].mxu0
    %v110 = vadd.f32 %v63, %v109
    %v111 = vpop.f32.mrb[0].mxu0
    %v112 = vpop.f32.mrb[0].mxu0
    %v113 = vpop.f32.mrb[0].mxu0
    %114 = vdwg.mxu0
    %v115 = vmax.f32 %v110, 0.0
    %v116 = vld [vmem:[#allocation7 + $0x2c] sm:$0xf]
    %v117 = vld [vmem:[#allocation7 + $0x30] sm:$0xf]
    %v118 = vld [vmem:[#allocation7 + $0x34] sm:$0xf]
    %v119 = vld [vmem:[#allocation7 + $0x38] sm:$0xf]
    %v120 = vld [vmem:[#allocation7 + $0x3c] sm:$0xf]
    %v121 = vld [vmem:[#allocation7 + $0x40] sm:$0xf]
    %v122 = vld [vmem:[#allocation7 + $0x44] sm:$0xf]
    %v123 = vld [vmem:[#allocation7 + $0x48] sm:$0xf]
    %v124 = vpack.c.bf16 %v115, %v115
    %v125 = vld [vmem:[%s3 + $0x3] sm:$0x1]
    %v126 = vlaneseq
    %v127 = vshrl.u32 %v126, 7
    %v128 = vsub.s32 0, %v127
    %v129 = vrot.slane %v125, %v128
    %v138 = vunpack.c.l.b16 %v116
    %v139 = vunpack.c.l.b16 %v117
    %v140 = vunpack.c.l.b16 %v118
    %v141 = vunpack.c.l.b16 %v119
    %v142 = vunpack.c.l.b16 %v120
    %v143 = vunpack.c.l.b16 %v121
    %v144 = vunpack.c.l.b16 %v122
    %v145 = vunpack.c.l.b16 %v123
    %v146 = vpack.c.b16 %v139, %v138
    %v147 = vpack.c.b16 %v141, %v140
    %v148 = vpack.c.b16 %v143, %v142
    %v149 = vpack.c.b16 %v145, %v144
    %vm154 = vcmask 523264
    %v156 = vsel %vm154, %v124, 0
    %158 = vmatprep.subr.bf16.mxu0 0
    %159 = vmatpush1.bf16.msra.mxu0 %v146
    %160 = vmatprep.subr.bf16.mxu0 0
    %161 = vmatpush1.bf16.msra.mxu0 %v147
    %162 = vmatprep.subr.bf16.mxu0 0
    %163 = vmatpush1.bf16.msra.mxu0 %v148
    %164 = vmatprep.subr.bf16.mxu0 0
    %165 = vmatpush1.bf16.msra.mxu0 %v149
    %166 = vmatprep.subr.bf16.mxu0 0
    %167 = vmatpush1.bf16.msra.mxu0 0
    %168 = vmatprep.subr.bf16.mxu0 0
    %169 = vmatpush1.bf16.msra.mxu0 0
    %170 = vmatprep.subr.bf16.mxu0 0
    %171 = vmatpush1.bf16.msra.mxu0 0
    %172 = vmatprep.subr.bf16.mxu0 0
    %173 = vmatpush1.bf16.msra.mxu0 0
    %174 = vmatprep.subr.bf16.mxu0 0
    %175 = vmatpush1.bf16.msra.mxu0 0
    %176 = vmatprep.subr.bf16.mxu0 0
    %177 = vmatpush1.bf16.msra.mxu0 0
    %178 = vmatprep.subr.bf16.mxu0 0
    %179 = vmatpush1.bf16.msra.mxu0 0
    %180 = vmatprep.subr.bf16.mxu0 0
    %181 = vmatpush1.bf16.msra.mxu0 0
    %182 = vmatprep.subr.bf16.mxu0 0
    %183 = vmatpush1.bf16.msra.mxu0 0
    %184 = vmatprep.subr.bf16.mxu0 0
    %185 = vmatpush1.bf16.msra.mxu0 0
    %186 = vmatprep.subr.bf16.mxu0 0
    %187 = vmatpush1.bf16.msra.mxu0 0
    %188 = vmatprep.subr.bf16.mxu0 0
    %189 = vmatpush1.bf16.msra.mxu0 0
    %190 = vmatprep.mubr.bf16.mxu0 0
    %191 = vmatmul.mubr.bf16.gmra.mrb[0].mxu0 %v156
    %v192 = vpop.f32.mrb[0].mxu0
    %v193 = vadd.f32 %v129, %v192
    %v194 = vpop.f32.mrb[0].mxu0
    %v195 = vpop.f32.mrb[0].mxu0
    %v196 = vpop.f32.mrb[0].mxu0
    %197 = vdwg.mxu0
    %v198 = vmax.f32 %v193, 0.0
    %v199 = vld [vmem:[#allocation2] sm:$0x1]
    %v200 = vld [vmem:[#allocation7] sm:$0xf]
    %v201 = vld [vmem:[#allocation7 + $0x4] sm:$0x1]
    %v202 = vpack.c.bf16 %v199, %v199
    %v203 = vld [vmem:[%s3] sm:$0x1]
    %v206 = vunpack.c.l.b16 %v200
    %v207 = vunpack.c.l.b16 %v201
    %v208 = vpack.c.b16 %v207, %v206
    %vm209 = vcmask 72704
    %v211 = vsel %vm209, %v202, 0
    %vm213 = vcmask 1043456
    %vm214 = vcmask 1044480
    %v215 = vsel %vm213, 4294967295, 65535
    %v216 = vsel %vm214, %v215, 0
    %v218 = vand.u32 %v208, %v216
    %220 = vmatprep.subr.bf16.mxu0 0
    %221 = vmatpush1.bf16.msra.mxu0 %v218
    %222 = vmatprep.subr.bf16.mxu0 0
    %223 = vmatpush1.bf16.msra.mxu0 0
    %224 = vmatprep.subr.bf16.mxu0 0
    %225 = vmatpush1.bf16.msra.mxu0 0
    %226 = vmatprep.subr.bf16.mxu0 0
    %227 = vmatpush1.bf16.msra.mxu0 0
    %228 = vmatprep.subr.bf16.mxu0 0
    %229 = vmatpush1.bf16.msra.mxu0 0
    %230 = vmatprep.subr.bf16.mxu0 0
    %231 = vmatpush1.bf16.msra.mxu0 0
    %232 = vmatprep.subr.bf16.mxu0 0
    %233 = vmatpush1.bf16.msra.mxu0 0
    %234 = vmatprep.subr.bf16.mxu0 0
    %235 = vmatpush1.bf16.msra.mxu0 0
    %236 = vmatprep.subr.bf16.mxu0 0
    %237 = vmatpush1.bf16.msra.mxu0 0
    %238 = vmatprep.subr.bf16.mxu0 0
    %239 = vmatpush1.bf16.msra.mxu0 0
    %240 = vmatprep.subr.bf16.mxu0 0
    %241 = vmatpush1.bf16.msra.mxu0 0
    %242 = vmatprep.subr.bf16.mxu0 0
    %243 = vmatpush1.bf16.msra.mxu0 0
    %244 = vmatprep.subr.bf16.mxu0 0
    %245 = vmatpush1.bf16.msra.mxu0 0
    %246 = vmatprep.subr.bf16.mxu0 0
    %247 = vmatpush1.bf16.msra.mxu0 0
    %248 = vmatprep.subr.bf16.mxu0 0
    %249 = vmatpush1.bf16.msra.mxu0 0
    %250 = vmatprep.subr.bf16.mxu0 0
    %251 = vmatpush1.bf16.msra.mxu0 0
    %252 = vmatprep.mubr.bf16.mxu0 0
    %253 = vmatmul.mubr.bf16.gmra.mrb[0].mxu0 %v211
    %v254 = vpop.f32.mrb[0].mxu0
    %v255 = vadd.f32 %v203, %v254
    %v256 = vpop.f32.mrb[0].mxu0
    %v257 = vpop.f32.mrb[0].mxu0
    %v258 = vpop.f32.mrb[0].mxu0
    %259 = vdwg.mxu0
    %v260 = vmax.f32 %v255, 0.0
    %v261 = vld [vmem:[#allocation7 + $0xc] sm:$0xf]
    %v262 = vld [vmem:[#allocation7 + $0x10] sm:$0xf]
    %v263 = vld [vmem:[#allocation7 + $0x14] sm:$0xf]
    %v264 = vld [vmem:[#allocation7 + $0x18] sm:$0xf]
    %v265 = vld [vmem:[#allocation7 + $0x1c] sm:$0xf]
    %v266 = vld [vmem:[#allocation7 + $0x20] sm:$0xf]
    %v267 = vld [vmem:[#allocation7 + $0x24] sm:$0xf]
    %v268 = vld [vmem:[#allocation7 + $0x28] sm:$0xf]
    %v269 = vpack.c.bf16 %v260, %v260
    %v270 = vld [vmem:[%s3 + $0x2] sm:$0x1]
    %v279 = vunpack.c.l.b16 %v261
    %v280 = vunpack.c.l.b16 %v262
    %v281 = vunpack.c.l.b16 %v263
    %v282 = vunpack.c.l.b16 %v264
    %v283 = vunpack.c.l.b16 %v265
    %v284 = vunpack.c.l.b16 %v266
    %v285 = vunpack.c.l.b16 %v267
    %v286 = vunpack.c.l.b16 %v268
    %v287 = vpack.c.b16 %v280, %v279
    %v288 = vpack.c.b16 %v282, %v281
    %v289 = vpack.c.b16 %v284, %v283
    %v290 = vpack.c.b16 %v286, %v285
    %v296 = vsel %vm154, %v269, 0
    %298 = vmatprep.subr.bf16.mxu0 0
    %299 = vmatpush1.bf16.msra.mxu0 %v287
    %300 = vmatprep.subr.bf16.mxu0 0
    %301 = vmatpush1.bf16.msra.mxu0 %v288
    %302 = vmatprep.subr.bf16.mxu0 0
    %303 = vmatpush1.bf16.msra.mxu0 %v289
    %304 = vmatprep.subr.bf16.mxu0 0
    %305 = vmatpush1.bf16.msra.mxu0 %v290
    %306 = vmatprep.subr.bf16.mxu0 0
    %307 = vmatpush1.bf16.msra.mxu0 0
    %308 = vmatprep.subr.bf16.mxu0 0
    %309 = vmatpush1.bf16.msra.mxu0 0
    %310 = vmatprep.subr.bf16.mxu0 0
    %311 = vmatpush1.bf16.msra.mxu0 0
    %312 = vmatprep.subr.bf16.mxu0 0
    %313 = vmatpush1.bf16.msra.mxu0 0
    %314 = vmatprep.subr.bf16.mxu0 0
    %315 = vmatpush1.bf16.msra.mxu0 0
    %316 = vmatprep.subr.bf16.mxu0 0
    %317 = vmatpush1.bf16.msra.mxu0 0
    %318 = vmatprep.subr.bf16.mxu0 0
    %319 = vmatpush1.bf16.msra.mxu0 0
    %320 = vmatprep.subr.bf16.mxu0 0
    %321 = vmatpush1.bf16.msra.mxu0 0
    %322 = vmatprep.subr.bf16.mxu0 0
    %323 = vmatpush1.bf16.msra.mxu0 0
    %324 = vmatprep.subr.bf16.mxu0 0
    %325 = vmatpush1.bf16.msra.mxu0 0
    %326 = vmatprep.subr.bf16.mxu0 0
    %327 = vmatpush1.bf16.msra.mxu0 0
    %328 = vmatprep.subr.bf16.mxu0 0
    %329 = vmatpush1.bf16.msra.mxu0 0
    %330 = vmatprep.mubr.bf16.mxu0 0
    %331 = vmatmul.mubr.bf16.gmra.mrb[0].mxu0 %v296
    %v332 = vpop.f32.mrb[0].mxu0
    %v333 = vadd.f32 %v270, %v332
    %v334 = vpop.f32.mrb[0].mxu0
    %v335 = vpop.f32.mrb[0].mxu0
    %v336 = vpop.f32.mrb[0].mxu0
    %337 = vdwg.mxu0
    %v338 = vmax.f32 %v333, 0.0
    %v340 = vrot.slane %v338, 3
    %v342 = vsel %vm214, %v198, %v340
    %v343 = vld [vmem:[#allocation7 + $0x4c] sm:$0xf]
    %v344 = vld [vmem:[#allocation7 + $0x50] sm:$0xf]
    %v345 = vld [vmem:[#allocation7 + $0x54] sm:$0xf]
    %v346 = vld [vmem:[#allocation7 + $0x58] sm:$0xf]
    %v347 = vpack.c.bf16 %v342, %v342
    %v352 = vunpack.c.l.b16 %v343
    %v353 = vunpack.c.l.b16 %v344
    %v354 = vunpack.c.l.b16 %v345
    %v355 = vunpack.c.l.b16 %v346
    %v356 = vpack.c.b16 %v353, %v352
    %v357 = vpack.c.b16 %v355, %v354
    %vm360 = vcmask 261120
    %v362 = vsel %vm360, %v347, 0
    %364 = vmatprep.subr.bf16.mxu0 0
    %365 = vmatpush1.bf16.msra.mxu0 %v356
    %366 = vmatprep.subr.bf16.mxu0 0
    %367 = vmatpush1.bf16.msra.mxu0 %v357
    %368 = vmatprep.subr.bf16.mxu0 0
    %369 = vmatpush1.bf16.msra.mxu0 0
    %370 = vmatprep.subr.bf16.mxu0 0
    %371 = vmatpush1.bf16.msra.mxu0 0
    %372 = vmatprep.subr.bf16.mxu0 0
    %373 = vmatpush1.bf16.msra.mxu0 0
    %374 = vmatprep.subr.bf16.mxu0 0
    %375 = vmatpush1.bf16.msra.mxu0 0
    %376 = vmatprep.subr.bf16.mxu0 0
    %377 = vmatpush1.bf16.msra.mxu0 0
    %378 = vmatprep.subr.bf16.mxu0 0
    %379 = vmatpush1.bf16.msra.mxu0 0
    %380 = vmatprep.subr.bf16.mxu0 0
    %381 = vmatpush1.bf16.msra.mxu0 0
    %382 = vmatprep.subr.bf16.mxu0 0
    %383 = vmatpush1.bf16.msra.mxu0 0
    %384 = vmatprep.subr.bf16.mxu0 0
    %385 = vmatpush1.bf16.msra.mxu0 0
    %386 = vmatprep.subr.bf16.mxu0 0
    %387 = vmatpush1.bf16.msra.mxu0 0
    %388 = vmatprep.subr.bf16.mxu0 0
    %389 = vmatpush1.bf16.msra.mxu0 0
    %390 = vmatprep.subr.bf16.mxu0 0
    %391 = vmatpush1.bf16.msra.mxu0 0
    %392 = vmatprep.subr.bf16.mxu0 0
    %393 = vmatpush1.bf16.msra.mxu0 0
    %394 = vmatprep.subr.bf16.mxu0 0
    %395 = vmatpush1.bf16.msra.mxu0 0
    %396 = vmatprep.mubr.bf16.mxu0 0
    %397 = vmatmul.mubr.bf16.gmra.mrb[0].mxu0 %v362
    %v398 = vpop.f32.mrb[0].mxu0
    %v399 = vadd.f32 0.0, %v398
    %v400 = vpop.f32.mrb[0].mxu0
    %v401 = vpop.f32.mrb[0].mxu0
    %v402 = vpop.f32.mrb[0].mxu0
    %403 = vdwg.mxu0
    %v404 = vpack.c.bf16 %v399, %v399
    %v406 = vsel %vm360, %v404, 0
    %408 = vmatprep.subr.bf16.mxu0 0
    %409 = vmatpush1.bf16.xpose.msra.mxu0 %v362
    %410 = vmatprep.subr.bf16.mxu0 0
    %411 = vmatpush1.bf16.xpose.msra.mxu0 0
    %412 = vmatprep.subr.bf16.mxu0 0
    %413 = vmatpush1.bf16.xpose.msra.mxu0 0
    %414 = vmatprep.subr.bf16.mxu0 0
    %415 = vmatpush1.bf16.xpose.msra.mxu0 0
    %416 = vmatprep.subr.bf16.mxu0 0
    %417 = vmatpush1.bf16.xpose.msra.mxu0 0
    %418 = vmatprep.subr.bf16.mxu0 0
    %419 = vmatpush1.bf16.xpose.msra.mxu0 0
    %420 = vmatprep.subr.bf16.mxu0 0
    %421 = vmatpush1.bf16.xpose.msra.mxu0 0
    %422 = vmatprep.subr.bf16.mxu0 0
    %423 = vmatpush1.bf16.xpose.msra.mxu0 0
    %424 = vmatprep.subr.bf16.mxu0 0
    %425 = vmatpush1.bf16.xpose.msra.mxu0 0
    %426 = vmatprep.subr.bf16.mxu0 0
    %427 = vmatpush1.bf16.xpose.msra.mxu0 0
    %428 = vmatprep.subr.bf16.mxu0 0
    %429 = vmatpush1.bf16.xpose.msra.mxu0 0
    %430 = vmatprep.subr.bf16.mxu0 0
    %431 = vmatpush1.bf16.xpose.msra.mxu0 0
    %432 = vmatprep.subr.bf16.mxu0 0
    %433 = vmatpush1.bf16.xpose.msra.mxu0 0
    %434 = vmatprep.subr.bf16.mxu0 0
    %435 = vmatpush1.bf16.xpose.msra.mxu0 0
    %436 = vmatprep.subr.bf16.mxu0 0
    %437 = vmatpush1.bf16.xpose.msra.mxu0 0
    %438 = vmatprep.subr.bf16.mxu0 0
    %439 = vmatpush1.bf16.xpose.msra.mxu0 0
    %440 = vmatprep.mubr.bf16.mxu0 0
    %441 = vmatmul.mubr.bf16.gmra.mrb[0].mxu0 %v406
    %v442 = vpop.f32.mrb[0].mxu0
    %v443 = vadd.f32 0.0, %v442
    %v444 = vpop.f32.mrb[0].mxu0
    %v445 = vpop.f32.mrb[0].mxu0
    %v446 = vpop.f32.mrb[0].mxu0
    %447 = vdwg.mxu0
    %v448 = vlaneseq
    %v449 = vshrl.u32 %v448, 7
    %v450 = vcvt.s32.f32 %v449
    %v451 = vlaneseq
    %v452 = vand.u32 %v451, 127
    %v453 = vcvt.s32.f32 %v452
    %vm454 = vcmp.lt.f32.partialorder %v450, 5.0
    %v455 = vrcp.pop 5.0
    %v456 = vmul.f32 %v450, %v455
    %v457 = vfloor.f32 %v456
    %v458 = vsub.f32 %v450, 5.0
    %v459 = vsel %vm454, %v457, %v458
    %vm460 = vcmp.lt.f32.partialorder %v453, 5.0
    %v461 = vmul.f32 %v453, %v455
    %v462 = vfloor.f32 %v461
    %v463 = vsub.f32 %v453, 5.0
    %v464 = vsel %vm460, %v462, %v463
    %vm465 = vcmp.eq.f32.partialorder %v459, %v464
    %v466 = vsel %vm465, %v443, -1e+30
    %vm467 = vcmask 46080
    %v468 = vsel %vm467, %v466, -inf
    %469 = vmax.xlane.f32.xlu0 %v468
    %v470 = vpop.xlane.xlu0 %469
    %v471 = vsub.f32 %v466, %v470
    %v472 = vmul.f32 %v471, 1.442695
    %v473 = vpow.pop %v472
    %v474 = vsel %vm467, %v473, 0.0
    %475 = vadd.xlane.f32.xlu0 %v474
    %v476 = vpop.xlane.xlu0 %475
    %v477 = vrcp.pop %v476
    %v478 = vmul.f32 %v473, %v477
    %v479 = vpack.c.bf16 %v478, %v478
    %vm480 = vcmask 48128
    %v482 = vsel %vm480, %v479, 0
    %v484 = vsel %vm69, %v347, 0
    %486 = vmatprep.subr.bf16.mxu0 0
    %487 = vmatpush1.bf16.msra.mxu0 %v484
    %488 = vmatprep.subr.bf16.mxu0 0
    %489 = vmatpush1.bf16.msra.mxu0 0
    %490 = vmatprep.subr.bf16.mxu0 0
    %491 = vmatpush1.bf16.msra.mxu0 0
    %492 = vmatprep.subr.bf16.mxu0 0
    %493 = vmatpush1.bf16.msra.mxu0 0
    %494 = vmatprep.subr.bf16.mxu0 0
    %495 = vmatpush1.bf16.msra.mxu0 0
    %496 = vmatprep.subr.bf16.mxu0 0
    %497 = vmatpush1.bf16.msra.mxu0 0
    %498 = vmatprep.subr.bf16.mxu0 0
    %499 = vmatpush1.bf16.msra.mxu0 0
    %500 = vmatprep.subr.bf16.mxu0 0
    %501 = vmatpush1.bf16.msra.mxu0 0
    %502 = vmatprep.subr.bf16.mxu0 0
    %503 = vmatpush1.bf16.msra.mxu0 0
    %504 = vmatprep.subr.bf16.mxu0 0
    %505 = vmatpush1.bf16.msra.mxu0 0
    %506 = vmatprep.subr.bf16.mxu0 0
    %507 = vmatpush1.bf16.msra.mxu0 0
    %508 = vmatprep.subr.bf16.mxu0 0
    %509 = vmatpush1.bf16.msra.mxu0 0
    %510 = vmatprep.subr.bf16.mxu0 0
    %511 = vmatpush1.bf16.msra.mxu0 0
    %512 = vmatprep.subr.bf16.mxu0 0
    %513 = vmatpush1.bf16.msra.mxu0 0
    %514 = vmatprep.subr.bf16.mxu0 0
    %515 = vmatpush1.bf16.msra.mxu0 0
    %516 = vmatprep.subr.bf16.mxu0 0
    %517 = vmatpush1.bf16.msra.mxu0 0
    %518 = vmatprep.mubr.bf16.mxu0 0
    %519 = vmatmul.mubr.bf16.gmra.mrb[0].mxu0 %v482
    %v520 = vpop.f32.mrb[0].mxu0
    %v521 = vadd.f32 0.0, %v520
    %v522 = vpop.f32.mrb[0].mxu0
    %v523 = vpop.f32.mrb[0].mxu0
    %v524 = vpop.f32.mrb[0].mxu0
    %525 = vdwg.mxu0
    %v526 = vld [vmem:[#allocation7 + $0x5c] sm:$0xf]
    %v527 = vld [vmem:[#allocation7 + $0x60] sm:$0xf]
    %v528 = vld [vmem:[#allocation7 + $0x64] sm:$0xf]
    %v529 = vld [vmem:[#allocation7 + $0x68] sm:$0xf]
    %v530 = vpack.c.bf16 %v521, %v521
    %v535 = vunpack.c.l.b16 %v526
    %v536 = vunpack.c.l.b16 %v527
    %v537 = vunpack.c.l.b16 %v528
    %v538 = vunpack.c.l.b16 %v529
    %v539 = vpack.c.b16 %v536, %v535
    %v540 = vpack.c.b16 %v538, %v537
    %v544 = vsel %vm360, %v530, 0
    %546 = vmatprep.subr.bf16.mxu0 0
    %547 = vmatpush1.bf16.msra.mxu0 %v539
    %548 = vmatprep.subr.bf16.mxu0 0
    %549 = vmatpush1.bf16.msra.mxu0 %v540
    %550 = vmatprep.subr.bf16.mxu0 0
    %551 = vmatpush1.bf16.msra.mxu0 0
    %552 = vmatprep.subr.bf16.mxu0 0
    %553 = vmatpush1.bf16.msra.mxu0 0
    %554 = vmatprep.subr.bf16.mxu0 0
    %555 = vmatpush1.bf16.msra.mxu0 0
    %556 = vmatprep.subr.bf16.mxu0 0
    %557 = vmatpush1.bf16.msra.mxu0 0
    %558 = vmatprep.subr.bf16.mxu0 0
    %559 = vmatpush1.bf16.msra.mxu0 0
    %560 = vmatprep.subr.bf16.mxu0 0
    %561 = vmatpush1.bf16.msra.mxu0 0
    %562 = vmatprep.subr.bf16.mxu0 0
    %563 = vmatpush1.bf16.msra.mxu0 0
    %564 = vmatprep.subr.bf16.mxu0 0
    %565 = vmatpush1.bf16.msra.mxu0 0
    %566 = vmatprep.subr.bf16.mxu0 0
    %567 = vmatpush1.bf16.msra.mxu0 0
    %568 = vmatprep.subr.bf16.mxu0 0
    %569 = vmatpush1.bf16.msra.mxu0 0
    %570 = vmatprep.subr.bf16.mxu0 0
    %571 = vmatpush1.bf16.msra.mxu0 0
    %572 = vmatprep.subr.bf16.mxu0 0
    %573 = vmatpush1.bf16.msra.mxu0 0
    %574 = vmatprep.subr.bf16.mxu0 0
    %575 = vmatpush1.bf16.msra.mxu0 0
    %576 = vmatprep.subr.bf16.mxu0 0
    %577 = vmatpush1.bf16.msra.mxu0 0
    %578 = vmatprep.mubr.bf16.mxu0 0
    %579 = vmatmul.mubr.bf16.gmra.mrb[0].mxu0 %v544
    %v580 = vpop.f32.mrb[0].mxu0
    %v581 = vadd.f32 0.0, %v580
    %v582 = vpop.f32.mrb[0].mxu0
    %v583 = vpop.f32.mrb[0].mxu0
    %v584 = vpop.f32.mrb[0].mxu0
    %585 = vdwg.mxu0
    %v586 = vmax.f32 %v581, 0.0
    %v587 = vpack.c.bf16 %v586, %v586
    %v589 = vsel %vm69, %v587, 0
    %591 = vmatprep.subr.bf16.mxu0 0
    %592 = vmatpush1.bf16.msra.mxu0 %v589
    %593 = vmatprep.subr.bf16.mxu0 0
    %594 = vmatpush1.bf16.msra.mxu0 0
    %595 = vmatprep.subr.bf16.mxu0 0
    %596 = vmatpush1.bf16.msra.mxu0 0
    %597 = vmatprep.subr.bf16.mxu0 0
    %598 = vmatpush1.bf16.msra.mxu0 0
    %599 = vmatprep.subr.bf16.mxu0 0
    %600 = vmatpush1.bf16.msra.mxu0 0
    %601 = vmatprep.subr.bf16.mxu0 0
    %602 = vmatpush1.bf16.msra.mxu0 0
    %603 = vmatprep.subr.bf16.mxu0 0
    %604 = vmatpush1.bf16.msra.mxu0 0
    %605 = vmatprep.subr.bf16.mxu0 0
    %606 = vmatpush1.bf16.msra.mxu0 0
    %607 = vmatprep.subr.bf16.mxu0 0
    %608 = vmatpush1.bf16.msra.mxu0 0
    %609 = vmatprep.subr.bf16.mxu0 0
    %610 = vmatpush1.bf16.msra.mxu0 0
    %611 = vmatprep.subr.bf16.mxu0 0
    %612 = vmatpush1.bf16.msra.mxu0 0
    %613 = vmatprep.subr.bf16.mxu0 0
    %614 = vmatpush1.bf16.msra.mxu0 0
    %615 = vmatprep.subr.bf16.mxu0 0
    %616 = vmatpush1.bf16.msra.mxu0 0
    %617 = vmatprep.subr.bf16.mxu0 0
    %618 = vmatpush1.bf16.msra.mxu0 0
    %619 = vmatprep.subr.bf16.mxu0 0
    %620 = vmatpush1.bf16.msra.mxu0 0
    %621 = vmatprep.subr.bf16.mxu0 0
    %622 = vmatpush1.bf16.msra.mxu0 0
    %623 = vmatprep.mubr.bf16.mxu0 0
    %624 = vmatmul.mubr.bf16.gmra.mrb[0].mxu0 %v482
    %v625 = vpop.f32.mrb[0].mxu0
    %v626 = vadd.f32 0.0, %v625
    %v627 = vpop.f32.mrb[0].mxu0
    %v628 = vpop.f32.mrb[0].mxu0
    %v629 = vpop.f32.mrb[0].mxu0
    %630 = vdwg.mxu0
    %v631 = vld [vmem:[#allocation7 + $0x6c] sm:$0xf]
    %v632 = vld [vmem:[#allocation7 + $0x70] sm:$0xf]
    %v633 = vld [vmem:[#allocation7 + $0x74] sm:$0xf]
    %v634 = vld [vmem:[#allocation7 + $0x78] sm:$0xf]
    %v635 = vpack.c.bf16 %v626, %v626
    %v640 = vunpack.c.l.b16 %v631
    %v641 = vunpack.c.l.b16 %v632
    %v642 = vunpack.c.l.b16 %v633
    %v643 = vunpack.c.l.b16 %v634
    %v644 = vpack.c.b16 %v641, %v640
    %v645 = vpack.c.b16 %v643, %v642
    %v649 = vsel %vm360, %v635, 0
    %651 = vmatprep.subr.bf16.mxu0 0
    %652 = vmatpush1.bf16.msra.mxu0 %v644
    %653 = vmatprep.subr.bf16.mxu0 0
    %654 = vmatpush1.bf16.msra.mxu0 %v645
    %655 = vmatprep.subr.bf16.mxu0 0
    %656 = vmatpush1.bf16.msra.mxu0 0
    %657 = vmatprep.subr.bf16.mxu0 0
    %658 = vmatpush1.bf16.msra.mxu0 0
    %659 = vmatprep.subr.bf16.mxu0 0
    %660 = vmatpush1.bf16.msra.mxu0 0
    %661 = vmatprep.subr.bf16.mxu0 0
    %662 = vmatpush1.bf16.msra.mxu0 0
    %663 = vmatprep.subr.bf16.mxu0 0
    %664 = vmatpush1.bf16.msra.mxu0 0
    %665 = vmatprep.subr.bf16.mxu0 0
    %666 = vmatpush1.bf16.msra.mxu0 0
    %667 = vmatprep.subr.bf16.mxu0 0
    %668 = vmatpush1.bf16.msra.mxu0 0
    %669 = vmatprep.subr.bf16.mxu0 0
    %670 = vmatpush1.bf16.msra.mxu0 0
    %671 = vmatprep.subr.bf16.mxu0 0
    %672 = vmatpush1.bf16.msra.mxu0 0
    %673 = vmatprep.subr.bf16.mxu0 0
    %674 = vmatpush1.bf16.msra.mxu0 0
    %675 = vmatprep.subr.bf16.mxu0 0
    %676 = vmatpush1.bf16.msra.mxu0 0
    %677 = vmatprep.subr.bf16.mxu0 0
    %678 = vmatpush1.bf16.msra.mxu0 0
    %679 = vmatprep.subr.bf16.mxu0 0
    %680 = vmatpush1.bf16.msra.mxu0 0
    %681 = vmatprep.subr.bf16.mxu0 0
    %682 = vmatpush1.bf16.msra.mxu0 0
    %683 = vmatprep.mubr.bf16.mxu0 0
    %684 = vmatmul.mubr.bf16.gmra.mrb[0].mxu0 %v649
    %v685 = vpop.f32.mrb[0].mxu0
    %v686 = vadd.f32 0.0, %v685
    %v687 = vpop.f32.mrb[0].mxu0
    %v688 = vpop.f32.mrb[0].mxu0
    %v689 = vpop.f32.mrb[0].mxu0
    %690 = vdwg.mxu0
    %v691 = vmax.f32 %v686, 0.0
    %v692 = vld [vmem:[#allocation7 + $0x7c] sm:$0xf]
    %v693 = vld [vmem:[#allocation7 + $0x80] sm:$0xf]
    %v694 = vld [vmem:[#allocation7 + $0x84] sm:$0xf]
    %v695 = vld [vmem:[#allocation7 + $0x88] sm:$0xf]
    %v696 = vpack.c.bf16 %v691, %v691
    %v697 = vld [vmem:[%s3 + $0x4] sm:$0x1]
    %v698 = vlaneseq
    %v699 = vshrl.u32 %v698, 7
    %v700 = vsub.s32 0, %v699
    %v701 = vrot.slane %v697, %v700
    %v706 = vunpack.c.l.b16 %v692
    %v707 = vunpack.c.l.b16 %v693
    %v708 = vunpack.c.l.b16 %v694
    %v709 = vunpack.c.l.b16 %v695
    %v710 = vpack.c.b16 %v707, %v706
    %v711 = vpack.c.b16 %v709, %v708
    %v715 = vsel %vm360, %v696, 0
    %717 = vmatprep.subr.bf16.mxu0 0
    %718 = vmatpush1.bf16.msra.mxu0 %v710
    %719 = vmatprep.subr.bf16.mxu0 0
    %720 = vmatpush1.bf16.msra.mxu0 %v711
    %721 = vmatprep.subr.bf16.mxu0 0
    %722 = vmatpush1.bf16.msra.mxu0 0
    %723 = vmatprep.subr.bf16.mxu0 0
    %724 = vmatpush1.bf16.msra.mxu0 0
    %725 = vmatprep.subr.bf16.mxu0 0
    %726 = vmatpush1.bf16.msra.mxu0 0
    %727 = vmatprep.subr.bf16.mxu0 0
    %728 = vmatpush1.bf16.msra.mxu0 0
    %729 = vmatprep.subr.bf16.mxu0 0
    %730 = vmatpush1.bf16.msra.mxu0 0
    %731 = vmatprep.subr.bf16.mxu0 0
    %732 = vmatpush1.bf16.msra.mxu0 0
    %733 = vmatprep.subr.bf16.mxu0 0
    %734 = vmatpush1.bf16.msra.mxu0 0
    %735 = vmatprep.subr.bf16.mxu0 0
    %736 = vmatpush1.bf16.msra.mxu0 0
    %737 = vmatprep.subr.bf16.mxu0 0
    %738 = vmatpush1.bf16.msra.mxu0 0
    %739 = vmatprep.subr.bf16.mxu0 0
    %740 = vmatpush1.bf16.msra.mxu0 0
    %741 = vmatprep.subr.bf16.mxu0 0
    %742 = vmatpush1.bf16.msra.mxu0 0
    %743 = vmatprep.subr.bf16.mxu0 0
    %744 = vmatpush1.bf16.msra.mxu0 0
    %745 = vmatprep.subr.bf16.mxu0 0
    %746 = vmatpush1.bf16.msra.mxu0 0
    %747 = vmatprep.subr.bf16.mxu0 0
    %748 = vmatpush1.bf16.msra.mxu0 0
    %749 = vmatprep.mubr.bf16.mxu0 0
    %750 = vmatmul.mubr.bf16.gmra.mrb[0].mxu0 %v715
    %v751 = vpop.f32.mrb[0].mxu0
    %v752 = vadd.f32 %v701, %v751
    %v753 = vpop.f32.mrb[0].mxu0
    %v754 = vpop.f32.mrb[0].mxu0
    %v755 = vpop.f32.mrb[0].mxu0
    %756 = vdwg.mxu0
    %v757 = vmax.f32 %v752, 0.0
    %v758 = vld [vmem:[#allocation7 + $0x8c] sm:$0xf]
    %v759 = vld [vmem:[#allocation7 + $0x90] sm:$0xf]
    %v760 = vld [vmem:[#allocation7 + $0x94] sm:$0xf]
    %v761 = vld [vmem:[#allocation7 + $0x98] sm:$0xf]
    %v762 = vld [vmem:[#allocation7 + $0x9c] sm:$0xf]
    %v763 = vld [vmem:[#allocation7 + $0xa0] sm:$0xf]
    %v764 = vld [vmem:[#allocation7 + $0xa4] sm:$0xf]
    %v765 = vld [vmem:[#allocation7 + $0xa8] sm:$0xf]
    %v766 = vpack.c.bf16 %v757, %v757
    %v767 = vld [vmem:[%s3 + $0x5] sm:$0x1]
    %v768 = vlaneseq
    %v769 = vshrl.u32 %v768, 7
    %v770 = vsub.s32 0, %v769
    %v771 = vrot.slane %v767, %v770
    %v780 = vunpack.c.l.b16 %v758
    %v781 = vunpack.c.l.b16 %v759
    %v782 = vunpack.c.l.b16 %v760
    %v783 = vunpack.c.l.b16 %v761
    %v784 = vunpack.c.l.b16 %v762
    %v785 = vunpack.c.l.b16 %v763
    %v786 = vunpack.c.l.b16 %v764
    %v787 = vunpack.c.l.b16 %v765
    %v788 = vpack.c.b16 %v781, %v780
    %v789 = vpack.c.b16 %v783, %v782
    %v790 = vpack.c.b16 %v785, %v784
    %v791 = vpack.c.b16 %v787, %v786
    %v797 = vsel %vm154, %v766, 0
    %799 = vmatprep.subr.bf16.mxu0 0
    %800 = vmatpush1.bf16.msra.mxu0 %v788
    %801 = vmatprep.subr.bf16.mxu0 0
    %802 = vmatpush1.bf16.msra.mxu0 %v789
    %803 = vmatprep.subr.bf16.mxu0 0
    %804 = vmatpush1.bf16.msra.mxu0 %v790
    %805 = vmatprep.subr.bf16.mxu0 0
    %806 = vmatpush1.bf16.msra.mxu0 %v791
    %807 = vmatprep.subr.bf16.mxu0 0
    %808 = vmatpush1.bf16.msra.mxu0 0
    %809 = vmatprep.subr.bf16.mxu0 0
    %810 = vmatpush1.bf16.msra.mxu0 0
    %811 = vmatprep.subr.bf16.mxu0 0
    %812 = vmatpush1.bf16.msra.mxu0 0
    %813 = vmatprep.subr.bf16.mxu0 0
    %814 = vmatpush1.bf16.msra.mxu0 0
    %815 = vmatprep.subr.bf16.mxu0 0
    %816 = vmatpush1.bf16.msra.mxu0 0
    %817 = vmatprep.subr.bf16.mxu0 0
    %818 = vmatpush1.bf16.msra.mxu0 0
    %819 = vmatprep.subr.bf16.mxu0 0
    %820 = vmatpush1.bf16.msra.mxu0 0
    %821 = vmatprep.subr.bf16.mxu0 0
    %822 = vmatpush1.bf16.msra.mxu0 0
    %823 = vmatprep.subr.bf16.mxu0 0
    %824 = vmatpush1.bf16.msra.mxu0 0
    %825 = vmatprep.subr.bf16.mxu0 0
    %826 = vmatpush1.bf16.msra.mxu0 0
    %827 = vmatprep.subr.bf16.mxu0 0
    %828 = vmatpush1.bf16.msra.mxu0 0
    %829 = vmatprep.subr.bf16.mxu0 0
    %830 = vmatpush1.bf16.msra.mxu0 0
    %831 = vmatprep.mubr.bf16.mxu0 0
    %832 = vmatmul.mubr.bf16.gmra.mrb[0].mxu0 %v797
    %v833 = vpop.f32.mrb[0].mxu0
    %v834 = vadd.f32 %v771, %v833
    %v835 = vpop.f32.mrb[0].mxu0
    %v836 = vpop.f32.mrb[0].mxu0
    %v837 = vpop.f32.mrb[0].mxu0
    %838 = vdwg.mxu0
    %839 = vst [vmem:[#allocation8] sm:$0x1f] %v834
    // Predicated region
    $region30: #{tpu_custom_call.1} parent=1 // pred_check
      _
    $region31: #{tpu_custom_call.1} parent=1 // pred_check_branch
      %841 = sbr.rel (0) target = $region33
    $region32: #{tpu_custom_call.1} parent=1 // pred_region
      %s843 = ssub.s32 128, 128
      %844 = vsyncadd [#allocation4], %s843
      %s846 = sshll.u32 [#allocation8], 4
      %s847 = int_to_ptr.vmem [resolvable:$true] %s846
      %849 = dma.vmem_to_hbm [thread:$0]  %s847, 128, %s4, [#allocation4]
    $region33: #{tpu_custom_call.1} parent=1 // pred_fallthru
      _
    // Predicated region
    $region34: #{tpu_custom_call.1} parent=1 // pred_check
      _
    $region35: #{tpu_custom_call.1} parent=1 // pred_check_branch
      %851 = sbr.rel (0) target = $region37
    $region36: #{tpu_custom_call.1} parent=1 // pred_region
      %852 = dma.done [#allocation4], 128
    $region37: #{tpu_custom_call.1} parent=1 // pred_fallthru
      _
    %853 = vsyncpa [#allocation3], 1
    %854 = vsyncpa [#allocation6], 1
    %855 = vsyncpa [#allocation4], 1

</llo_original>
